<compile_context>
chip_gen: v6e
topology: v6e:2x2x1
jax: 0.10.0
libtpu: 0.0.40
codegen_flags: <defaults>
</compile_context>

<pallas_src>
import functools

import jax
import jax.numpy as jnp
from jax import lax
from jax.experimental import pallas as pl
from jax.experimental.pallas import tpu as pltpu


def _gat_fused_kernel(h_ref, adj_ref, wt_ref, bw_ref, asrc_ref, adst_ref, ba_ref,
                      out_ref, *, alpha, nheads, fh):
    """All heads in one invocation; output is the concatenated [N, H*Fh] block."""
    h = h_ref[...]                       # [N, F_in]
    adj = adj_ref[...]                   # [N, N]    adj[dst, src]
    wt = wt_ref[...]                     # [F_in, H*Fh]   per-head W^T, lane-concatenated
    bw = bw_ref[...]                     # [1, H*Fh]
    a_src = asrc_ref[...]                # [H, H*Fh]  block-structured (row h holds a_src[h])
    a_dst = adst_ref[...]                # [H, H*Fh]  block-structured (row h holds a_dst[h])
    b_a = ba_ref[...]                    # [1, H]

    # Fused linear layer across all heads -> one MXU dot.
    wh = jnp.dot(h, wt, preferred_element_type=jnp.float32) + bw          # [N, H*Fh]

    # Per-head attention scores via MXU (contract the feature axis directly;
    # no XLU transpose of skinny vectors).
    #   src_t[hd, j] = sum_f a_src[hd, f] * wh[j, f]      -> already lane-major [H, N]
    #   dst[i, hd]   = sum_f wh[i, f]    * a_dst[hd, f]   -> [N, H]   (+ b_a folded in)
    src_t = lax.dot_general(a_src, wh, (((1,), (1,)), ((), ())),
                            preferred_element_type=jnp.float32)           # [H, N]
    dst = lax.dot_general(wh, a_dst, (((1,), (1,)), ((), ())),
                          preferred_element_type=jnp.float32) + b_a       # [N, H]

    valid = adj > 0
    neg_inf = jnp.float32(-1e30)

    outs = []
    for hd in range(nheads):                     # static loop, fully unrolled (H is tiny)
        # e[i, j] = dst_score[i] + src_score[j] + b_a   (b_a already in dst)
        e = dst[:, hd:hd + 1] + src_t[hd:hd + 1, :]                       # [N, N]
        e = jnp.where(e > 0, e, alpha * e)                                # LeakyReLU
        # masked softmax over incoming edges (source axis = last axis);
        # mask applied before the row max so masked entries never leak into m.
        e = jnp.where(valid, e, neg_inf)
        m = jnp.max(e, axis=-1, keepdims=True)
        p = jnp.exp(e - m)
        p = jnp.where(valid, p, 0.0)
        denom = jnp.sum(p, axis=-1, keepdims=True)
        # guard against an all-masked row (wrapper's self-loops make this unreachable,
        # but keep the kernel NaN-free if the invariant is violated)
        denom = jnp.maximum(denom, jnp.float32(1e-30))
        # exact reciprocal: denom is only [N, 1], so the divide is negligible; the
        # approximate EUP reciprocal introduced ~1e-2 absolute output error.
        attn = p * (jnp.float32(1.0) / denom)
        wh_h = wh[:, hd * fh:(hd + 1) * fh]                               # [N, Fh]
        outs.append(jnp.dot(attn, wh_h, preferred_element_type=jnp.float32))

    # single lane-dense store of the concatenated heads
    out_ref[...] = jnp.concatenate(outs, axis=-1)                         # [N, H*Fh]


def gat_forward(h, adj, Wt, bW, a_src, a_dst, b_a, *, alpha):
    """Multi-head GAT forward (== torch.cat([head_0, ..., head_{H-1}], dim=1)).

    h     : [N, F_in]      node features
    adj   : [N, N]         adj[dst, src] = 1.0 if edge src->dst, else 0.0
    Wt    : [H, F_in, Fh]  per-head W.weight^T
    bW    : [H, 1, Fh]     per-head W.bias
    a_src : [H, 1, Fh]     per-head a.weight[:, :Fh]   (acts on Wh_src)
    a_dst : [H, 1, Fh]     per-head a.weight[:, Fh:]   (acts on Wh_dst)
    b_a   : [H, 1, 1]      per-head a.bias
    returns [N, H*Fh]
    """
    H, F_in, Fh = Wt.shape
    N = h.shape[0]
    HF = H * Fh

    # --- host/XLA-side (tiny, one-time) parameter repacking -------------------
    # fused weight / bias: heads concatenated along the output-feature (lane) axis
    Wt_all = jnp.transpose(Wt, (1, 0, 2)).reshape(F_in, HF)               # [F_in, H*Fh]
    bW_all = jnp.transpose(bW, (1, 0, 2)).reshape(1, HF)                  # [1, H*Fh]
    # block-structured score projections: row hd holds a_*[hd] in cols hd*Fh:(hd+1)*Fh
    eye = jnp.eye(H, dtype=jnp.float32)                                   # [H, H]
    A_src = (eye[:, :, None] * a_src.reshape(H, 1, Fh)).reshape(H, HF)    # [H, H*Fh]
    A_dst = (eye[:, :, None] * a_dst.reshape(H, 1, Fh)).reshape(H, HF)    # [H, H*Fh]
    b_a_row = b_a.reshape(1, H)                                           # [1, H]

    kernel = functools.partial(_gat_fused_kernel, alpha=alpha, nheads=H, fh=Fh)

    out = pl.pallas_call(
        kernel,
        out_shape=jax.ShapeDtypeStruct((N, HF), jnp.float32),
        grid=(1,),
        in_specs=[
            pl.BlockSpec((N, F_in), lambda i: (0, 0)),   # h
            pl.BlockSpec((N, N), lambda i: (0, 0)),      # adjacency
            pl.BlockSpec((F_in, HF), lambda i: (0, 0)),  # fused W^T
            pl.BlockSpec((1, HF), lambda i: (0, 0)),     # fused W bias
            pl.BlockSpec((H, HF), lambda i: (0, 0)),     # block-structured a_src
            pl.BlockSpec((H, HF), lambda i: (0, 0)),     # block-structured a_dst
            pl.BlockSpec((1, H), lambda i: (0, 0)),      # a bias per head
        ],
        out_specs=pl.BlockSpec((N, HF), lambda i: (0, 0)),
        compiler_params=pltpu.CompilerParams(
            dimension_semantics=("arbitrary",)),
    )(h, adj, Wt_all, bW_all, A_src, A_dst, b_a_row)

    return out


def gat_reference(h, adj, Wt, bW, a_src, a_dst, b_a, *, alpha):
    """Pure-JAX reference for correctness checking."""
    outs = []
    for hd in range(Wt.shape[0]):
        wh = h @ Wt[hd] + bW[hd]
        s = jnp.sum(wh * a_src[hd], axis=-1, keepdims=True)
        d = jnp.sum(wh * a_dst[hd], axis=-1, keepdims=True)
        e = d + s.T + b_a[hd]
        e = jnp.where(e > 0, e, alpha * e)
        e = jnp.where(adj > 0, e, -jnp.inf)
        attn = jax.nn.softmax(e, axis=-1)
        outs.append(attn @ wh)
    return jnp.concatenate(outs, axis=1)


if __name__ == "__main__":
    # Small deterministic problem: N nodes, multi-head GAT.
    N = 16          # number of nodes
    NFEAT = 32      # in_features (nfeat)
    NHID = 32       # nhid
    NHEADS = 4      # heads
    FH = NHID // NHEADS
    ALPHA = 0.2     # LeakyReLU negative slope
    # dropout is inactive in eval mode -> identity

    key = jax.random.PRNGKey(0)
    k_h, k_adj, k_w, k_bw, k_a, k_ba = jax.random.split(key, 6)

    # node features
    h = jax.random.normal(k_h, (N, NFEAT), dtype=jnp.float32)

    # dense adjacency, plus self-loops so every destination node has at least one
    # incoming edge (matches how nodes are pulled in the DGL graph).
    adj = (jax.random.uniform(k_adj, (N, N)) > 0.6).astype(jnp.float32)
    adj = jnp.maximum(adj, jnp.eye(N, dtype=jnp.float32))

    # per-head parameters (xavier_uniform-like, gain = 1.414), deterministic.
    gain = 1.414
    lim_w = gain * jnp.sqrt(6.0 / (NFEAT + FH))
    W = jax.random.uniform(k_w, (NHEADS, FH, NFEAT), minval=-lim_w, maxval=lim_w,
                           dtype=jnp.float32)           # torch Linear weight [out, in]
    Wt = jnp.transpose(W, (0, 2, 1))                    # [H, F_in, Fh]
    bW = jax.random.uniform(k_bw, (NHEADS, 1, FH), minval=-0.1, maxval=0.1,
                            dtype=jnp.float32)

    lim_a = gain * jnp.sqrt(6.0 / (2 * FH + 1))
    a_w = jax.random.uniform(k_a, (NHEADS, 1, 2 * FH), minval=-lim_a, maxval=lim_a,
                             dtype=jnp.float32)         # a.weight [1, 2*Fh] per head
    a_src = a_w[:, :, :FH]                              # acts on Wh_src
    a_dst = a_w[:, :, FH:]                              # acts on Wh_dst
    b_a = jax.random.uniform(k_ba, (NHEADS, 1, 1), minval=-0.1, maxval=0.1,
                             dtype=jnp.float32)

    out = gat_forward(h, adj, Wt, bW, a_src, a_dst, b_a, alpha=ALPHA)
    out = jax.block_until_ready(out)

    ref = gat_reference(h, adj, Wt, bW, a_src, a_dst, b_a, alpha=ALPHA)
    assert out.shape == (N, NHID), out.shape
    # exact softmax reciprocal -> tight tolerance again (only MXU accumulation noise)
    assert jnp.allclose(out, ref, atol=1e-3, rtol=1e-3), \
        f"max abs err {jnp.max(jnp.abs(out - ref))}"

    print("KERNEL_OK")
</pallas_src>

<mosaic_0001>
module attributes {stable_mosaic.version = 11 : i64} {
  func.func @_gat_fused_kernel(%arg0: i32, %arg1: memref<16x32xf32, #tpu.memory_space<vmem>>, %arg2: memref<16x16xf32, #tpu.memory_space<vmem>>, %arg3: memref<32x32xf32, #tpu.memory_space<vmem>>, %arg4: memref<1x32xf32, #tpu.memory_space<vmem>>, %arg5: memref<4x32xf32, #tpu.memory_space<vmem>>, %arg6: memref<4x32xf32, #tpu.memory_space<vmem>>, %arg7: memref<1x4xf32, #tpu.memory_space<vmem>>, %arg8: memref<16x32xf32, #tpu.memory_space<vmem>>) attributes {dimension_semantics = [#tpu.dimension_semantics<arbitrary>], iteration_bounds = array<i64: 1>, scalar_prefetch = 0 : i64, scratch_operands = 0 : i64, tpu.core_type = #tpu.core_type<tc>, window_params = [{pipeline_mode = #tpu.pipeline_mode<synchronous>, transform_indices = @transform_0, window_bounds = array<i64: 16, 32>}, {pipeline_mode = #tpu.pipeline_mode<synchronous>, transform_indices = @transform_1, window_bounds = array<i64: 16, 16>}, {pipeline_mode = #tpu.pipeline_mode<synchronous>, transform_indices = @transform_2, window_bounds = array<i64: 32, 32>}, {pipeline_mode = #tpu.pipeline_mode<synchronous>, transform_indices = @transform_3, window_bounds = array<i64: 1, 32>}, {pipeline_mode = #tpu.pipeline_mode<synchronous>, transform_indices = @transform_4, window_bounds = array<i64: 4, 32>}, {pipeline_mode = #tpu.pipeline_mode<synchronous>, transform_indices = @transform_5, window_bounds = array<i64: 4, 32>}, {pipeline_mode = #tpu.pipeline_mode<synchronous>, transform_indices = @transform_6, window_bounds = array<i64: 1, 4>}, {pipeline_mode = #tpu.pipeline_mode<synchronous>, transform_indices = @transform_7, window_bounds = array<i64: 16, 32>}]} {
    %c0 = arith.constant 0 : index
    %c0_0 = arith.constant 0 : index
    %0 = vector.load %arg1[%c0, %c0_0] : memref<16x32xf32, #tpu.memory_space<vmem>>, vector<16x32xf32>
    %c0_1 = arith.constant 0 : index
    %c0_2 = arith.constant 0 : index
    %1 = vector.load %arg2[%c0_1, %c0_2] : memref<16x16xf32, #tpu.memory_space<vmem>>, vector<16x16xf32>
    %c0_3 = arith.constant 0 : index
    %c0_4 = arith.constant 0 : index
    %2 = vector.load %arg3[%c0_3, %c0_4] : memref<32x32xf32, #tpu.memory_space<vmem>>, vector<32x32xf32>
    %c0_5 = arith.constant 0 : index
    %c0_6 = arith.constant 0 : index
    %3 = vector.load %arg4[%c0_5, %c0_6] : memref<1x32xf32, #tpu.memory_space<vmem>>, vector<1x32xf32>
    %c0_7 = arith.constant 0 : index
    %c0_8 = arith.constant 0 : index
    %4 = vector.load %arg5[%c0_7, %c0_8] : memref<4x32xf32, #tpu.memory_space<vmem>>, vector<4x32xf32>
    %c0_9 = arith.constant 0 : index
    %c0_10 = arith.constant 0 : index
    %5 = vector.load %arg6[%c0_9, %c0_10] : memref<4x32xf32, #tpu.memory_space<vmem>>, vector<4x32xf32>
    %c0_11 = arith.constant 0 : index
    %c0_12 = arith.constant 0 : index
    %6 = vector.load %arg7[%c0_11, %c0_12] : memref<1x4xf32, #tpu.memory_space<vmem>>, vector<1x4xf32>
    %cst = arith.constant dense<0.000000e+00> : vector<16x32xf32>
    %7 = tpu.matmul %0, %2, %cst {dimension_numbers = #tpu.dot_dimension_numbers<[1], [0], [0], [1], [0, 0, 1, 1], [], []>} : vector<16x32xf32>, vector<32x32xf32>, vector<16x32xf32> -> vector<16x32xf32>
    %8 = vector.broadcast %3 : vector<1x32xf32> to vector<16x32xf32>
    %9 = arith.addf %7, %8 : vector<16x32xf32>
    %cst_13 = arith.constant dense<0.000000e+00> : vector<4x16xf32>
    %10 = tpu.matmul %4, %9, %cst_13 {dimension_numbers = #tpu.dot_dimension_numbers<[1], [1], [0], [0], [0, 0, 1, 0], [], []>} : vector<4x32xf32>, vector<16x32xf32>, vector<4x16xf32> -> vector<4x16xf32>
    %cst_14 = arith.constant dense<0.000000e+00> : vector<16x4xf32>
    %11 = tpu.matmul %9, %5, %cst_14 {dimension_numbers = #tpu.dot_dimension_numbers<[1], [1], [0], [0], [0, 0, 1, 0], [], []>} : vector<16x32xf32>, vector<4x32xf32>, vector<16x4xf32> -> vector<16x4xf32>
    %12 = vector.broadcast %6 : vector<1x4xf32> to vector<16x4xf32>
    %13 = arith.addf %11, %12 : vector<16x4xf32>
    %cst_15 = arith.constant 0.000000e+00 : f32
    %14 = vector.broadcast %cst_15 : f32 to vector<16x16xf32>
    %15 = arith.cmpf ogt, %1, %14 : vector<16x16xf32>
    %16 = vector.extract_strided_slice %13 {offsets = [0, 0], sizes = [16, 1], strides = [1, 1]} : vector<16x4xf32> to vector<16x1xf32>
    %17 = vector.extract_strided_slice %10 {offsets = [0, 0], sizes = [1, 16], strides = [1, 1]} : vector<4x16xf32> to vector<1x16xf32>
    %18 = vector.broadcast %16 : vector<16x1xf32> to vector<16x16xf32>
    %19 = vector.broadcast %17 : vector<1x16xf32> to vector<16x16xf32>
    %20 = arith.addf %18, %19 : vector<16x16xf32>
    %cst_16 = arith.constant 0.000000e+00 : f32
    %21 = vector.broadcast %cst_16 : f32 to vector<16x16xf32>
    %22 = arith.cmpf ogt, %20, %21 : vector<16x16xf32>
    %cst_17 = arith.constant 2.000000e-01 : f32
    %23 = vector.broadcast %cst_17 : f32 to vector<16x16xf32>
    %24 = arith.mulf %23, %20 : vector<16x16xf32>
    %25 = arith.select %22, %20, %24 : vector<16x16xi1>, vector<16x16xf32>
    %cst_18 = arith.constant -1.000000e+30 : f32
    %26 = vector.broadcast %cst_18 : f32 to vector<16x16xf32>
    %27 = arith.select %15, %25, %26 : vector<16x16xi1>, vector<16x16xf32>
    %cst_19 = arith.constant dense<0xFF800000> : vector<16xf32>
    %28 = vector.multi_reduction <maximumf>, %27, %cst_19 [1] : vector<16x16xf32> to vector<16xf32>
    %29 = vector.shape_cast %28 : vector<16xf32> to vector<16x1xf32>
    %30 = vector.broadcast %29 : vector<16x1xf32> to vector<16x16xf32>
    %31 = arith.subf %27, %30 : vector<16x16xf32>
    %32 = math.exp %31 : vector<16x16xf32>
    %cst_20 = arith.constant 0.000000e+00 : f32
    %33 = vector.broadcast %cst_20 : f32 to vector<16x16xf32>
    %34 = arith.select %15, %32, %33 : vector<16x16xi1>, vector<16x16xf32>
    %cst_21 = arith.constant dense<0.000000e+00> : vector<16xf32>
    %35 = vector.multi_reduction <add>, %34, %cst_21 [1] : vector<16x16xf32> to vector<16xf32>
    %36 = vector.shape_cast %35 : vector<16xf32> to vector<16x1xf32>
    %cst_22 = arith.constant 1.000000e-30 : f32
    %37 = vector.broadcast %cst_22 : f32 to vector<16x1xf32>
    %38 = arith.maximumf %36, %37 : vector<16x1xf32>
    %cst_23 = arith.constant 1.000000e+00 : f32
    %39 = vector.broadcast %cst_23 : f32 to vector<16x1xf32>
    %40 = arith.divf %39, %38 : vector<16x1xf32>
    %41 = vector.broadcast %40 : vector<16x1xf32> to vector<16x16xf32>
    %42 = arith.mulf %34, %41 : vector<16x16xf32>
    %43 = vector.extract_strided_slice %9 {offsets = [0, 0], sizes = [16, 8], strides = [1, 1]} : vector<16x32xf32> to vector<16x8xf32>
    %cst_24 = arith.constant dense<0.000000e+00> : vector<16x8xf32>
    %44 = tpu.matmul %42, %43, %cst_24 {dimension_numbers = #tpu.dot_dimension_numbers<[1], [0], [0], [1], [0, 0, 1, 1], [], []>} : vector<16x16xf32>, vector<16x8xf32>, vector<16x8xf32> -> vector<16x8xf32>
    %45 = vector.extract_strided_slice %13 {offsets = [0, 1], sizes = [16, 1], strides = [1, 1]} : vector<16x4xf32> to vector<16x1xf32>
    %46 = vector.extract_strided_slice %10 {offsets = [1, 0], sizes = [1, 16], strides = [1, 1]} : vector<4x16xf32> to vector<1x16xf32>
    %47 = vector.broadcast %45 : vector<16x1xf32> to vector<16x16xf32>
    %48 = vector.broadcast %46 : vector<1x16xf32> to vector<16x16xf32>
    %49 = arith.addf %47, %48 : vector<16x16xf32>
    %cst_25 = arith.constant 0.000000e+00 : f32
    %50 = vector.broadcast %cst_25 : f32 to vector<16x16xf32>
    %51 = arith.cmpf ogt, %49, %50 : vector<16x16xf32>
    %cst_26 = arith.constant 2.000000e-01 : f32
    %52 = vector.broadcast %cst_26 : f32 to vector<16x16xf32>
    %53 = arith.mulf %52, %49 : vector<16x16xf32>
    %54 = arith.select %51, %49, %53 : vector<16x16xi1>, vector<16x16xf32>
    %cst_27 = arith.constant -1.000000e+30 : f32
    %55 = vector.broadcast %cst_27 : f32 to vector<16x16xf32>
    %56 = arith.select %15, %54, %55 : vector<16x16xi1>, vector<16x16xf32>
    %cst_28 = arith.constant dense<0xFF800000> : vector<16xf32>
    %57 = vector.multi_reduction <maximumf>, %56, %cst_28 [1] : vector<16x16xf32> to vector<16xf32>
    %58 = vector.shape_cast %57 : vector<16xf32> to vector<16x1xf32>
    %59 = vector.broadcast %58 : vector<16x1xf32> to vector<16x16xf32>
    %60 = arith.subf %56, %59 : vector<16x16xf32>
    %61 = math.exp %60 : vector<16x16xf32>
    %cst_29 = arith.constant 0.000000e+00 : f32
    %62 = vector.broadcast %cst_29 : f32 to vector<16x16xf32>
    %63 = arith.select %15, %61, %62 : vector<16x16xi1>, vector<16x16xf32>
    %cst_30 = arith.constant dense<0.000000e+00> : vector<16xf32>
    %64 = vector.multi_reduction <add>, %63, %cst_30 [1] : vector<16x16xf32> to vector<16xf32>
    %65 = vector.shape_cast %64 : vector<16xf32> to vector<16x1xf32>
    %cst_31 = arith.constant 1.000000e-30 : f32
    %66 = vector.broadcast %cst_31 : f32 to vector<16x1xf32>
    %67 = arith.maximumf %65, %66 : vector<16x1xf32>
    %cst_32 = arith.constant 1.000000e+00 : f32
    %68 = vector.broadcast %cst_32 : f32 to vector<16x1xf32>
    %69 = arith.divf %68, %67 : vector<16x1xf32>
    %70 = vector.broadcast %69 : vector<16x1xf32> to vector<16x16xf32>
    %71 = arith.mulf %63, %70 : vector<16x16xf32>
    %72 = vector.extract_strided_slice %9 {offsets = [0, 8], sizes = [16, 8], strides = [1, 1]} : vector<16x32xf32> to vector<16x8xf32>
    %cst_33 = arith.constant dense<0.000000e+00> : vector<16x8xf32>
    %73 = tpu.matmul %71, %72, %cst_33 {dimension_numbers = #tpu.dot_dimension_numbers<[1], [0], [0], [1], [0, 0, 1, 1], [], []>} : vector<16x16xf32>, vector<16x8xf32>, vector<16x8xf32> -> vector<16x8xf32>
    %74 = vector.extract_strided_slice %13 {offsets = [0, 2], sizes = [16, 1], strides = [1, 1]} : vector<16x4xf32> to vector<16x1xf32>
    %75 = vector.extract_strided_slice %10 {offsets = [2, 0], sizes = [1, 16], strides = [1, 1]} : vector<4x16xf32> to vector<1x16xf32>
    %76 = vector.broadcast %74 : vector<16x1xf32> to vector<16x16xf32>
    %77 = vector.broadcast %75 : vector<1x16xf32> to vector<16x16xf32>
    %78 = arith.addf %76, %77 : vector<16x16xf32>
    %cst_34 = arith.constant 0.000000e+00 : f32
    %79 = vector.broadcast %cst_34 : f32 to vector<16x16xf32>
    %80 = arith.cmpf ogt, %78, %79 : vector<16x16xf32>
    %cst_35 = arith.constant 2.000000e-01 : f32
    %81 = vector.broadcast %cst_35 : f32 to vector<16x16xf32>
    %82 = arith.mulf %81, %78 : vector<16x16xf32>
    %83 = arith.select %80, %78, %82 : vector<16x16xi1>, vector<16x16xf32>
    %cst_36 = arith.constant -1.000000e+30 : f32
    %84 = vector.broadcast %cst_36 : f32 to vector<16x16xf32>
    %85 = arith.select %15, %83, %84 : vector<16x16xi1>, vector<16x16xf32>
    %cst_37 = arith.constant dense<0xFF800000> : vector<16xf32>
    %86 = vector.multi_reduction <maximumf>, %85, %cst_37 [1] : vector<16x16xf32> to vector<16xf32>
    %87 = vector.shape_cast %86 : vector<16xf32> to vector<16x1xf32>
    %88 = vector.broadcast %87 : vector<16x1xf32> to vector<16x16xf32>
    %89 = arith.subf %85, %88 : vector<16x16xf32>
    %90 = math.exp %89 : vector<16x16xf32>
    %cst_38 = arith.constant 0.000000e+00 : f32
    %91 = vector.broadcast %cst_38 : f32 to vector<16x16xf32>
    %92 = arith.select %15, %90, %91 : vector<16x16xi1>, vector<16x16xf32>
    %cst_39 = arith.constant dense<0.000000e+00> : vector<16xf32>
    %93 = vector.multi_reduction <add>, %92, %cst_39 [1] : vector<16x16xf32> to vector<16xf32>
    %94 = vector.shape_cast %93 : vector<16xf32> to vector<16x1xf32>
    %cst_40 = arith.constant 1.000000e-30 : f32
    %95 = vector.broadcast %cst_40 : f32 to vector<16x1xf32>
    %96 = arith.maximumf %94, %95 : vector<16x1xf32>
    %cst_41 = arith.constant 1.000000e+00 : f32
    %97 = vector.broadcast %cst_41 : f32 to vector<16x1xf32>
    %98 = arith.divf %97, %96 : vector<16x1xf32>
    %99 = vector.broadcast %98 : vector<16x1xf32> to vector<16x16xf32>
    %100 = arith.mulf %92, %99 : vector<16x16xf32>
    %101 = vector.extract_strided_slice %9 {offsets = [0, 16], sizes = [16, 8], strides = [1, 1]} : vector<16x32xf32> to vector<16x8xf32>
    %cst_42 = arith.constant dense<0.000000e+00> : vector<16x8xf32>
    %102 = tpu.matmul %100, %101, %cst_42 {dimension_numbers = #tpu.dot_dimension_numbers<[1], [0], [0], [1], [0, 0, 1, 1], [], []>} : vector<16x16xf32>, vector<16x8xf32>, vector<16x8xf32> -> vector<16x8xf32>
    %103 = vector.extract_strided_slice %13 {offsets = [0, 3], sizes = [16, 1], strides = [1, 1]} : vector<16x4xf32> to vector<16x1xf32>
    %104 = vector.extract_strided_slice %10 {offsets = [3, 0], sizes = [1, 16], strides = [1, 1]} : vector<4x16xf32> to vector<1x16xf32>
    %105 = vector.broadcast %103 : vector<16x1xf32> to vector<16x16xf32>
    %106 = vector.broadcast %104 : vector<1x16xf32> to vector<16x16xf32>
    %107 = arith.addf %105, %106 : vector<16x16xf32>
    %cst_43 = arith.constant 0.000000e+00 : f32
    %108 = vector.broadcast %cst_43 : f32 to vector<16x16xf32>
    %109 = arith.cmpf ogt, %107, %108 : vector<16x16xf32>
    %cst_44 = arith.constant 2.000000e-01 : f32
    %110 = vector.broadcast %cst_44 : f32 to vector<16x16xf32>
    %111 = arith.mulf %110, %107 : vector<16x16xf32>
    %112 = arith.select %109, %107, %111 : vector<16x16xi1>, vector<16x16xf32>
    %cst_45 = arith.constant -1.000000e+30 : f32
    %113 = vector.broadcast %cst_45 : f32 to vector<16x16xf32>
    %114 = arith.select %15, %112, %113 : vector<16x16xi1>, vector<16x16xf32>
    %cst_46 = arith.constant dense<0xFF800000> : vector<16xf32>
    %115 = vector.multi_reduction <maximumf>, %114, %cst_46 [1] : vector<16x16xf32> to vector<16xf32>
    %116 = vector.shape_cast %115 : vector<16xf32> to vector<16x1xf32>
    %117 = vector.broadcast %116 : vector<16x1xf32> to vector<16x16xf32>
    %118 = arith.subf %114, %117 : vector<16x16xf32>
    %119 = math.exp %118 : vector<16x16xf32>
    %cst_47 = arith.constant 0.000000e+00 : f32
    %120 = vector.broadcast %cst_47 : f32 to vector<16x16xf32>
    %121 = arith.select %15, %119, %120 : vector<16x16xi1>, vector<16x16xf32>
    %cst_48 = arith.constant dense<0.000000e+00> : vector<16xf32>
    %122 = vector.multi_reduction <add>, %121, %cst_48 [1] : vector<16x16xf32> to vector<16xf32>
    %123 = vector.shape_cast %122 : vector<16xf32> to vector<16x1xf32>
    %cst_49 = arith.constant 1.000000e-30 : f32
    %124 = vector.broadcast %cst_49 : f32 to vector<16x1xf32>
    %125 = arith.maximumf %123, %124 : vector<16x1xf32>
    %cst_50 = arith.constant 1.000000e+00 : f32
    %126 = vector.broadcast %cst_50 : f32 to vector<16x1xf32>
    %127 = arith.divf %126, %125 : vector<16x1xf32>
    %128 = vector.broadcast %127 : vector<16x1xf32> to vector<16x16xf32>
    %129 = arith.mulf %121, %128 : vector<16x16xf32>
    %130 = vector.extract_strided_slice %9 {offsets = [0, 24], sizes = [16, 8], strides = [1, 1]} : vector<16x32xf32> to vector<16x8xf32>
    %cst_51 = arith.constant dense<0.000000e+00> : vector<16x8xf32>
    %131 = tpu.matmul %129, %130, %cst_51 {dimension_numbers = #tpu.dot_dimension_numbers<[1], [0], [0], [1], [0, 0, 1, 1], [], []>} : vector<16x16xf32>, vector<16x8xf32>, vector<16x8xf32> -> vector<16x8xf32>
    %132 = tpu.concatenate %44, %73, %102, %131 in 1 : vector<16x8xf32>, vector<16x8xf32>, vector<16x8xf32>, vector<16x8xf32> -> vector<16x32xf32>
    %c0_52 = arith.constant 0 : index
    %c0_53 = arith.constant 0 : index
    %133 = vector.load %arg8[%c0_52, %c0_53] : memref<16x32xf32, #tpu.memory_space<vmem>>, vector<16x32xf32>
    tpu.vector_store %arg8[%c0_52, %c0_53], %132 {strides = array<i32>} : memref<16x32xf32, #tpu.memory_space<vmem>>, vector<16x32xf32>,
    return
  }
  func.func @transform_0(%arg0: i32) -> (i32, i32) {
    %c0_i32 = arith.constant 0 : i32
    %c0_i32_0 = arith.constant 0 : i32
    %c0_i32_1 = arith.constant 0 : i32
    return %c0_i32, %c0_i32_0 : i32, i32
  }
  func.func @transform_1(%arg0: i32) -> (i32, i32) {
    %c0_i32 = arith.constant 0 : i32
    %c0_i32_0 = arith.constant 0 : i32
    %c0_i32_1 = arith.constant 0 : i32
    return %c0_i32, %c0_i32_0 : i32, i32
  }
  func.func @transform_2(%arg0: i32) -> (i32, i32) {
    %c0_i32 = arith.constant 0 : i32
    %c0_i32_0 = arith.constant 0 : i32
    %c0_i32_1 = arith.constant 0 : i32
    return %c0_i32, %c0_i32_0 : i32, i32
  }
  func.func @transform_3(%arg0: i32) -> (i32, i32) {
    %c0_i32 = arith.constant 0 : i32
    %c0_i32_0 = arith.constant 0 : i32
    %c0_i32_1 = arith.constant 0 : i32
    return %c0_i32, %c0_i32_0 : i32, i32
  }
  func.func @transform_4(%arg0: i32) -> (i32, i32) {
    %c0_i32 = arith.constant 0 : i32
    %c0_i32_0 = arith.constant 0 : i32
    %c0_i32_1 = arith.constant 0 : i32
    return %c0_i32, %c0_i32_0 : i32, i32
  }
  func.func @transform_5(%arg0: i32) -> (i32, i32) {
    %c0_i32 = arith.constant 0 : i32
    %c0_i32_0 = arith.constant 0 : i32
    %c0_i32_1 = arith.constant 0 : i32
    return %c0_i32, %c0_i32_0 : i32, i32
  }
  func.func @transform_6(%arg0: i32) -> (i32, i32) {
    %c0_i32 = arith.constant 0 : i32
    %c0_i32_0 = arith.constant 0 : i32
    %c0_i32_1 = arith.constant 0 : i32
    return %c0_i32, %c0_i32_0 : i32, i32
  }
  func.func @transform_7(%arg0: i32) -> (i32, i32) {
    %c0_i32 = arith.constant 0 : i32
    %c0_i32_0 = arith.constant 0 : i32
    %c0_i32_1 = arith.constant 0 : i32
    return %c0_i32, %c0_i32_0 : i32, i32
  }
}

</mosaic_0001>

<llo_original>
// kernel: tpu_custom_call.1
$region0: #{tpu_custom_call.1}
  #allocation0 [shape = 'u32[]', space=smem, size = 0x4, offset = 0x4, fixed_abs, tag = 'smem constant byte address 0x4 - core index']
  #allocation1 [shape = 'u32[144,128]{1,0:T(1,128)}', space=vmem, size = 0x12000, scoped, tag = 'internal scratch']
  %s0 = inlined_call_operand.hbm [shape: f32[16,32], index: 0, kind: input, shape index: {}]
  %s1 = inlined_call_operand.hbm [shape: f32[16,16], index: 1, kind: input, shape index: {}]
  %s2 = inlined_call_operand.hbm [shape: f32[32,32], index: 2, kind: input, shape index: {}]
  %s3 = inlined_call_operand.vmem [shape: f32[1,32], index: 3, kind: input, shape index: {}]
  %s4 = inlined_call_operand.vmem [shape: f32[4,32], index: 4, kind: input, shape index: {}]
  %s5 = inlined_call_operand.vmem [shape: f32[4,32], index: 5, kind: input, shape index: {}]
  %s6 = inlined_call_operand.vmem [shape: f32[1,4], index: 6, kind: input, shape index: {}]
  %s7 = inlined_call_operand.hbm [shape: f32[16,32], index: 7, kind: output, shape index: {}]
  %s8 = sld [smem:[#allocation0]]
  $region50: #{tpu_custom_call.1} parent=0
    _
  %s10 = ssub.s32 1, %s8
  %s11 = scalar_select 0, %s10, %s8
  $region1: #{tpu_custom_call.1} parent=0
    #allocation2 [shape = 'u8[8192]{0}', space=vmem, size = 0x2000, scoped, tag = 'input window, operand 0, single buffered']
    #allocation3 [shape = 's32[1]{0}', space=sflag, size = 0x4, scoped, tag = 'scoped memory for tpu_custom_call.1']
    #allocation4 [shape = 's32[1]{0}', space=sflag, size = 0x4, scoped, tag = 'scoped memory for tpu_custom_call.1']
    #allocation5 [shape = 'u8[8192]{0}', space=vmem, size = 0x2000, scoped, tag = 'input window, operand 1, single buffered']
    #allocation6 [shape = 's32[1]{0}', space=sflag, size = 0x4, scoped, tag = 'scoped memory for tpu_custom_call.1']
    #allocation7 [shape = 'u8[16384]{0}', space=vmem, size = 0x4000, scoped, tag = 'input window, operand 2, single buffered']
    #allocation8 [shape = 'u8[8192]{0}', space=vmem, size = 0x2000, scoped, tag = 'output window, operand 0, single buffered']
    %12 = vsyncpa [#allocation3], 0
    %13 = vsyncpa [#allocation6], 0
    %14 = vsyncpa [#allocation4], 0
    // Predicated region
    $region2: #{tpu_custom_call.1} parent=1 // pred_check
      _
    $region3: #{tpu_custom_call.1} parent=1 // pred_check_branch
      %16 = sbr.rel (0) target = $region5
    $region4: #{tpu_custom_call.1} parent=1 // pred_region
      %s18 = ssub.s32 256, 256
      %19 = vsyncadd [#allocation3], %s18
      %s20 = sshll.u32 [#allocation2], 4
      %s21 = int_to_ptr.vmem [resolvable:$true] %s20
      %26 = dma.hbm_to_vmem [thread:$0]  %s0, 256, %s21, [#allocation3], 128, 128, 8
    $region5: #{tpu_custom_call.1} parent=1 // pred_fallthru
      _
    // Predicated region
    $region6: #{tpu_custom_call.1} parent=1 // pred_check
      _
    $region7: #{tpu_custom_call.1} parent=1 // pred_check_branch
      %28 = sbr.rel (0) target = $region9
    $region8: #{tpu_custom_call.1} parent=1 // pred_region
      %s30 = ssub.s32 256, 256
      %31 = vsyncadd [#allocation6], %s30
      %s32 = sshll.u32 [#allocation5], 4
      %s33 = int_to_ptr.vmem [resolvable:$true] %s32
      %38 = dma.hbm_to_vmem [thread:$0]  %s1, 256, %s33, [#allocation6], 128, 128, 8
    $region9: #{tpu_custom_call.1} parent=1 // pred_fallthru
      _
    // Predicated region
    $region10: #{tpu_custom_call.1} parent=1 // pred_check
      _
    $region11: #{tpu_custom_call.1} parent=1 // pred_check_branch
      %40 = sbr.rel (0) target = $region13
    $region12: #{tpu_custom_call.1} parent=1 // pred_region
      %s42 = ssub.s32 512, 512
      %43 = vsyncadd [#allocation6], %s42
      %s44 = sshll.u32 [#allocation7], 4
      %s45 = int_to_ptr.vmem [resolvable:$true] %s44
      %50 = dma.hbm_to_vmem [thread:$0]  %s2, 512, %s45, [#allocation6], 128, 128, 8
    $region13: #{tpu_custom_call.1} parent=1 // pred_fallthru
      _
    // Predicated region
    $region14: #{tpu_custom_call.1} parent=1 // pred_check
      _
    $region15: #{tpu_custom_call.1} parent=1 // pred_check_branch
      %52 = sbr.rel (0) target = $region17
    $region16: #{tpu_custom_call.1} parent=1 // pred_region
      _
    $region17: #{tpu_custom_call.1} parent=1 // pred_fallthru
      _
    // Predicated region
    $region18: #{tpu_custom_call.1} parent=1 // pred_check
      _
    $region19: #{tpu_custom_call.1} parent=1 // pred_check_branch
      %54 = sbr.rel (0) target = $region21
    $region20: #{tpu_custom_call.1} parent=1 // pred_region
      _
    $region21: #{tpu_custom_call.1} parent=1 // pred_fallthru
      _
    // Predicated region
    $region22: #{tpu_custom_call.1} parent=1 // pred_check
      _
    $region23: #{tpu_custom_call.1} parent=1 // pred_check_branch
      %56 = sbr.rel (0) target = $region25
    $region24: #{tpu_custom_call.1} parent=1 // pred_region
      _
    $region25: #{tpu_custom_call.1} parent=1 // pred_fallthru
      _
    // Predicated region
    $region26: #{tpu_custom_call.1} parent=1 // pred_check
      _
    $region27: #{tpu_custom_call.1} parent=1 // pred_check_branch
      %58 = sbr.rel (0) target = $region29
    $region28: #{tpu_custom_call.1} parent=1 // pred_region
      _
    $region29: #{tpu_custom_call.1} parent=1 // pred_fallthru
      _
    // Predicated region
    $region30: #{tpu_custom_call.1} parent=1 // pred_check
      _
    $region31: #{tpu_custom_call.1} parent=1 // pred_check_branch
      %60 = sbr.rel (0) target = $region33
    $region32: #{tpu_custom_call.1} parent=1 // pred_region
      %61 = dma.done [#allocation3], 256
    $region33: #{tpu_custom_call.1} parent=1 // pred_fallthru
      _
    // Predicated region
    $region34: #{tpu_custom_call.1} parent=1 // pred_check
      _
    $region35: #{tpu_custom_call.1} parent=1 // pred_check_branch
      %63 = sbr.rel (0) target = $region37
    $region36: #{tpu_custom_call.1} parent=1 // pred_region
      %64 = dma.done [#allocation6], 256
    $region37: #{tpu_custom_call.1} parent=1 // pred_fallthru
      _
    // Predicated region
    $region38: #{tpu_custom_call.1} parent=1 // pred_check
      _
    $region39: #{tpu_custom_call.1} parent=1 // pred_check_branch
      %66 = sbr.rel (0) target = $region41
    $region40: #{tpu_custom_call.1} parent=1 // pred_region
      %67 = dma.done [#allocation6], 512
    $region41: #{tpu_custom_call.1} parent=1 // pred_fallthru
      _
    %v68 = vld [vmem:[#allocation2] sm:$0xff]
    %v69 = vld [vmem:[#allocation2 + $0x8] sm:$0xff]
    %v70 = vld [vmem:[#allocation5] sm:$0xff]
    %v71 = vld [vmem:[#allocation5 + $0x8] sm:$0xff]
    %v72 = vld [vmem:[#allocation7] sm:$0xff]
    %v73 = vld [vmem:[#allocation7 + $0x8] sm:$0xff]
    %v74 = vld [vmem:[#allocation7 + $0x10] sm:$0xff]
    %v75 = vld [vmem:[#allocation7 + $0x18] sm:$0xff]
    %v76 = vld [vmem:[%s3] sm:$0x1]
    %v77 = vld [vmem:[%s4] sm:$0xf]
    %v78 = vld [vmem:[%s5] sm:$0xf]
    %v79 = vld [vmem:[%s6] sm:$0x1]
    %v81 = vlaneseq
    %v82 = vshrl.u32 %v81, 7
    %v83 = vsub.s32 0, %v82
    %v84 = vrot.slane %v76, %v83
    %vm86 = vcmask 261120
    %v88 = vsel %vm86, %v68, 0
    %v91 = vsel %vm86, %v69, 0
    %93 = vmatprep.subr.mxu0 0.0
    %94 = vmatpush1.msra.mxu0 0.0
    %95 = vmatprep.subr.mxu0 0.0
    %96 = vmatpush1.msra.mxu0 0.0
    %97 = vmatprep.subr.mxu0 0.0
    %98 = vmatpush1.msra.mxu0 0.0
    %99 = vmatprep.subr.mxu0 0.0
    %100 = vmatpush1.msra.mxu0 0.0
    %101 = vmatprep.subr.mxu0 0.0
    %102 = vmatpush1.msra.mxu0 0.0
    %103 = vmatprep.subr.mxu0 0.0
    %104 = vmatpush1.msra.mxu0 0.0
    %105 = vmatprep.subr.mxu0 0.0
    %106 = vmatpush1.msra.mxu0 0.0
    %107 = vmatprep.subr.mxu0 0.0
    %108 = vmatpush1.msra.mxu0 0.0
    %109 = vmatprep.subr.mxu0 0.0
    %110 = vmatpush1.msra.mxu0 0.0
    %111 = vmatprep.subr.mxu0 0.0
    %112 = vmatpush1.msra.mxu0 0.0
    %113 = vmatprep.subr.mxu0 0.0
    %114 = vmatpush1.msra.mxu0 0.0
    %115 = vmatprep.subr.mxu0 0.0
    %116 = vmatpush1.msra.mxu0 0.0
    %117 = vmatprep.subr.mxu0 0.0
    %118 = vmatpush1.msra.mxu0 %v75
    %119 = vmatprep.subr.mxu0 0.0
    %120 = vmatpush1.msra.mxu0 %v74
    %121 = vmatprep.subr.mxu0 0.0
    %122 = vmatpush1.msra.mxu0 %v73
    %123 = vmatprep.subr.mxu0 0.0
    %124 = vmatpush1.msra.mxu0 %v72
    %125 = vmatprep.subr.mxu0 0.0
    %126 = vmatpush2.msra.mxu0 0.0
    %127 = vmatprep.subr.mxu0 0.0
    %128 = vmatpush2.msra.mxu0 0.0
    %129 = vmatprep.subr.mxu0 0.0
    %130 = vmatpush2.msra.mxu0 0.0
    %131 = vmatprep.subr.mxu0 0.0
    %132 = vmatpush2.msra.mxu0 0.0
    %133 = vmatprep.subr.mxu0 0.0
    %134 = vmatpush2.msra.mxu0 0.0
    %135 = vmatprep.subr.mxu0 0.0
    %136 = vmatpush2.msra.mxu0 0.0
    %137 = vmatprep.subr.mxu0 0.0
    %138 = vmatpush2.msra.mxu0 0.0
    %139 = vmatprep.subr.mxu0 0.0
    %140 = vmatpush2.msra.mxu0 0.0
    %141 = vmatprep.subr.mxu0 0.0
    %142 = vmatpush2.msra.mxu0 0.0
    %143 = vmatprep.subr.mxu0 0.0
    %144 = vmatpush2.msra.mxu0 0.0
    %145 = vmatprep.subr.mxu0 0.0
    %146 = vmatpush2.msra.mxu0 0.0
    %147 = vmatprep.subr.mxu0 0.0
    %148 = vmatpush2.msra.mxu0 0.0
    %149 = vmatprep.subr.mxu0 0.0
    %150 = vmatpush2.msra.mxu0 0.0
    %151 = vmatprep.subr.mxu0 0.0
    %152 = vmatpush2.msra.mxu0 0.0
    %153 = vmatprep.subr.mxu0 0.0
    %154 = vmatpush2.msra.mxu0 0.0
    %155 = vmatprep.subr.mxu0 0.0
    %156 = vmatpush2.msra.mxu0 0.0
    %157 = vmatprep.mubr.f32.mxu0 0.0
    %158 = vmatmul.mubr.f32.gmra.mxu0 %v88
    %v159 = vpop.f32.mrf.mxu0
    %v160 = vadd.f32 %v84, %v159
    %v161 = vpop.f32.mrf.mxu0
    %162 = vmatprep.mubr.f32.mxu0 0.0
    %163 = vmatmul.mubr.f32.gmra.mxu0 %v91
    %v164 = vpop.f32.mrf.mxu0
    %v165 = vadd.f32 %v84, %v164
    %v166 = vpop.f32.mrf.mxu0
    %167 = vdwg.mxu0
    %v169 = vsel %vm86, %v77, 0
    %v172 = vsel %vm86, %v160, 0
    %v175 = vsel %vm86, %v165, 0
    %177 = vmatprep.subr.mxu0 0.0
    %178 = vmatpush1.xpose.msra.mxu0 0.0
    %179 = vmatprep.subr.mxu0 0.0
    %180 = vmatpush1.xpose.msra.mxu0 0.0
    %181 = vmatprep.subr.mxu0 0.0
    %182 = vmatpush1.xpose.msra.mxu0 0.0
    %183 = vmatprep.subr.mxu0 0.0
    %184 = vmatpush1.xpose.msra.mxu0 0.0
    %185 = vmatprep.subr.mxu0 0.0
    %186 = vmatpush1.xpose.msra.mxu0 0.0
    %187 = vmatprep.subr.mxu0 0.0
    %188 = vmatpush1.xpose.msra.mxu0 0.0
    %189 = vmatprep.subr.mxu0 0.0
    %190 = vmatpush1.xpose.msra.mxu0 0.0
    %191 = vmatprep.subr.mxu0 0.0
    %192 = vmatpush1.xpose.msra.mxu0 0.0
    %193 = vmatprep.subr.mxu0 0.0
    %194 = vmatpush1.xpose.msra.mxu0 0.0
    %195 = vmatprep.subr.mxu0 0.0
    %196 = vmatpush1.xpose.msra.mxu0 0.0
    %197 = vmatprep.subr.mxu0 0.0
    %198 = vmatpush1.xpose.msra.mxu0 0.0
    %199 = vmatprep.subr.mxu0 0.0
    %200 = vmatpush1.xpose.msra.mxu0 0.0
    %201 = vmatprep.subr.mxu0 0.0
    %202 = vmatpush1.xpose.msra.mxu0 0.0
    %203 = vmatprep.subr.mxu0 0.0
    %204 = vmatpush1.xpose.msra.mxu0 0.0
    %205 = vmatprep.subr.mxu0 0.0
    %206 = vmatpush1.xpose.msra.mxu0 %v175
    %207 = vmatprep.subr.mxu0 0.0
    %208 = vmatpush1.xpose.msra.mxu0 %v172
    %209 = vmatprep.subr.mxu0 0.0
    %210 = vmatpush2.xpose.msra.mxu0 0.0
    %211 = vmatprep.subr.mxu0 0.0
    %212 = vmatpush2.xpose.msra.mxu0 0.0
    %213 = vmatprep.subr.mxu0 0.0
    %214 = vmatpush2.xpose.msra.mxu0 0.0
    %215 = vmatprep.subr.mxu0 0.0
    %216 = vmatpush2.xpose.msra.mxu0 0.0
    %217 = vmatprep.subr.mxu0 0.0
    %218 = vmatpush2.xpose.msra.mxu0 0.0
    %219 = vmatprep.subr.mxu0 0.0
    %220 = vmatpush2.xpose.msra.mxu0 0.0
    %221 = vmatprep.subr.mxu0 0.0
    %222 = vmatpush2.xpose.msra.mxu0 0.0
    %223 = vmatprep.subr.mxu0 0.0
    %224 = vmatpush2.xpose.msra.mxu0 0.0
    %225 = vmatprep.subr.mxu0 0.0
    %226 = vmatpush2.xpose.msra.mxu0 0.0
    %227 = vmatprep.subr.mxu0 0.0
    %228 = vmatpush2.xpose.msra.mxu0 0.0
    %229 = vmatprep.subr.mxu0 0.0
    %230 = vmatpush2.xpose.msra.mxu0 0.0
    %231 = vmatprep.subr.mxu0 0.0
    %232 = vmatpush2.xpose.msra.mxu0 0.0
    %233 = vmatprep.subr.mxu0 0.0
    %234 = vmatpush2.xpose.msra.mxu0 0.0
    %235 = vmatprep.subr.mxu0 0.0
    %236 = vmatpush2.xpose.msra.mxu0 0.0
    %237 = vmatprep.subr.mxu0 0.0
    %238 = vmatpush2.xpose.msra.mxu0 0.0
    %239 = vmatprep.subr.mxu0 0.0
    %240 = vmatpush2.xpose.msra.mxu0 0.0
    %241 = vmatprep.mubr.f32.mxu0 0.0
    %242 = vmatmul.mubr.f32.gmra.mxu0 %v169
    %v243 = vpop.f32.mrf.mxu0
    %v244 = vadd.f32 0.0, %v243
    %v245 = vpop.f32.mrf.mxu0
    %246 = vdwg.mxu0
    %v248 = vlaneseq
    %v249 = vshrl.u32 %v248, 7
    %v250 = vsub.s32 0, %v249
    %v251 = vrot.slane %v79, %v250
    %v254 = vsel %vm86, %v78, 0
    %256 = vmatprep.subr.mxu0 0.0
    %257 = vmatpush1.xpose.msra.mxu0 0.0
    %258 = vmatprep.subr.mxu0 0.0
    %259 = vmatpush1.xpose.msra.mxu0 0.0
    %260 = vmatprep.subr.mxu0 0.0
    %261 = vmatpush1.xpose.msra.mxu0 0.0
    %262 = vmatprep.subr.mxu0 0.0
    %263 = vmatpush1.xpose.msra.mxu0 0.0
    %264 = vmatprep.subr.mxu0 0.0
    %265 = vmatpush1.xpose.msra.mxu0 0.0
    %266 = vmatprep.subr.mxu0 0.0
    %267 = vmatpush1.xpose.msra.mxu0 0.0
    %268 = vmatprep.subr.mxu0 0.0
    %269 = vmatpush1.xpose.msra.mxu0 0.0
    %270 = vmatprep.subr.mxu0 0.0
    %271 = vmatpush1.xpose.msra.mxu0 0.0
    %272 = vmatprep.subr.mxu0 0.0
    %273 = vmatpush1.xpose.msra.mxu0 0.0
    %274 = vmatprep.subr.mxu0 0.0
    %275 = vmatpush1.xpose.msra.mxu0 0.0
    %276 = vmatprep.subr.mxu0 0.0
    %277 = vmatpush1.xpose.msra.mxu0 0.0
    %278 = vmatprep.subr.mxu0 0.0
    %279 = vmatpush1.xpose.msra.mxu0 0.0
    %280 = vmatprep.subr.mxu0 0.0
    %281 = vmatpush1.xpose.msra.mxu0 0.0
    %282 = vmatprep.subr.mxu0 0.0
    %283 = vmatpush1.xpose.msra.mxu0 0.0
    %284 = vmatprep.subr.mxu0 0.0
    %285 = vmatpush1.xpose.msra.mxu0 0.0
    %286 = vmatprep.subr.mxu0 0.0
    %287 = vmatpush1.xpose.msra.mxu0 %v254
    %288 = vmatprep.subr.mxu0 0.0
    %289 = vmatpush2.xpose.msra.mxu0 0.0
    %290 = vmatprep.subr.mxu0 0.0
    %291 = vmatpush2.xpose.msra.mxu0 0.0
    %292 = vmatprep.subr.mxu0 0.0
    %293 = vmatpush2.xpose.msra.mxu0 0.0
    %294 = vmatprep.subr.mxu0 0.0
    %295 = vmatpush2.xpose.msra.mxu0 0.0
    %296 = vmatprep.subr.mxu0 0.0
    %297 = vmatpush2.xpose.msra.mxu0 0.0
    %298 = vmatprep.subr.mxu0 0.0
    %299 = vmatpush2.xpose.msra.mxu0 0.0
    %300 = vmatprep.subr.mxu0 0.0
    %301 = vmatpush2.xpose.msra.mxu0 0.0
    %302 = vmatprep.subr.mxu0 0.0
    %303 = vmatpush2.xpose.msra.mxu0 0.0
    %304 = vmatprep.subr.mxu0 0.0
    %305 = vmatpush2.xpose.msra.mxu0 0.0
    %306 = vmatprep.subr.mxu0 0.0
    %307 = vmatpush2.xpose.msra.mxu0 0.0
    %308 = vmatprep.subr.mxu0 0.0
    %309 = vmatpush2.xpose.msra.mxu0 0.0
    %310 = vmatprep.subr.mxu0 0.0
    %311 = vmatpush2.xpose.msra.mxu0 0.0
    %312 = vmatprep.subr.mxu0 0.0
    %313 = vmatpush2.xpose.msra.mxu0 0.0
    %314 = vmatprep.subr.mxu0 0.0
    %315 = vmatpush2.xpose.msra.mxu0 0.0
    %316 = vmatprep.subr.mxu0 0.0
    %317 = vmatpush2.xpose.msra.mxu0 0.0
    %318 = vmatprep.subr.mxu0 0.0
    %319 = vmatpush2.xpose.msra.mxu0 0.0
    %320 = vmatprep.mubr.f32.mxu0 0.0
    %321 = vmatmul.mubr.f32.gmra.mxu0 %v172
    %v322 = vpop.f32.mrf.mxu0
    %v323 = vadd.f32 %v251, %v322
    %v324 = vpop.f32.mrf.mxu0
    %325 = vmatprep.mubr.f32.mxu0 0.0
    %326 = vmatmul.mubr.f32.gmra.mxu0 %v175
    %v327 = vpop.f32.mrf.mxu0
    %v328 = vadd.f32 %v251, %v327
    %v329 = vpop.f32.mrf.mxu0
    %330 = vdwg.mxu0
    %vm331 = vcmp.gt.f32.partialorder %v70, 0.0
    %vm332 = vcmp.gt.f32.partialorder %v71, 0.0
    %334 = vset.pattern.permute.xlu0 0
    %335 = vperm.xlu0 %334, %v323
    %v336 = vpop.permute.xlu0 %335
    %339 = vset.pattern.permute.xlu0 0
    %340 = vperm.xlu0 %339, %v328
    %v341 = vpop.permute.xlu0 %340
    %v343 = vlaneseq
    %v344 = vshrl.u32 %v343, 7
    %v345 = vsub.s32 0, %v344
    %v346 = vrot.slane %v244, %v345
    %v347 = vadd.f32 %v336, %v346
    %v348 = vadd.f32 %v341, %v346
    %vm349 = vcmp.gt.f32.partialorder %v347, 0.0
    %vm350 = vcmp.gt.f32.partialorder %v348, 0.0
    %v351 = vmul.f32 %v347, 0.2
    %v352 = vmul.f32 %v348, 0.2
    %v353 = vsel %vm349, %v347, %v351
    %v354 = vsel %vm350, %v348, %v352
    %v355 = vsel %vm331, %v353, -1e+30
    %v356 = vsel %vm332, %v354, -1e+30
    %vm357 = vcmask 130048
    %v358 = vsel %vm357, %v355, -inf
    %359 = vmax.xlane.f32.xlu0 %v358
    %v360 = vpop.xlane.xlu0 %359
    %v361 = vsel %vm357, %v356, -inf
    %362 = vmax.xlane.f32.xlu0 %v361
    %v363 = vpop.xlane.xlu0 %362
    %v364 = vsub.f32 %v355, %v360
    %v365 = vsub.f32 %v356, %v363
    %v366 = vmul.f32 %v364, 1.442695
    %v367 = vpow.pop %v366
    %v368 = vmul.f32 %v365, 1.442695
    %v369 = vpow.pop %v368
    %v370 = vsel %vm331, %v367, 0.0
    %v371 = vsel %vm332, %v369, 0.0
    %v372 = vsel %vm357, %v370, 0.0
    %373 = vadd.xlane.f32.xlu0 %v372
    %v374 = vpop.xlane.xlu0 %373
    %v375 = vsel %vm357, %v371, 0.0
    %376 = vadd.xlane.f32.xlu0 %v375
    %v377 = vpop.xlane.xlu0 %376
    %v378 = vmax.f32 %v374, 1e-30
    %v379 = vmax.f32 %v377, 1e-30
    %v380 = vrcp.pop %v378
    %v381 = vmul.f32 1.0, %v380
    %v382 = vrcp.pop %v379
    %v383 = vmul.f32 1.0, %v382
    %v384 = vmul.f32 %v370, %v381
    %v385 = vmul.f32 %v371, %v383
    %v387 = vsel %vm357, %v384, 0
    %v390 = vsel %vm357, %v385, 0
    %392 = vmatprep.subr.mxu0 0.0
    %393 = vmatpush1.msra.mxu0 0.0
    %394 = vmatprep.subr.mxu0 0.0
    %395 = vmatpush1.msra.mxu0 0.0
    %396 = vmatprep.subr.mxu0 0.0
    %397 = vmatpush1.msra.mxu0 0.0
    %398 = vmatprep.subr.mxu0 0.0
    %399 = vmatpush1.msra.mxu0 0.0
    %400 = vmatprep.subr.mxu0 0.0
    %401 = vmatpush1.msra.mxu0 0.0
    %402 = vmatprep.subr.mxu0 0.0
    %403 = vmatpush1.msra.mxu0 0.0
    %404 = vmatprep.subr.mxu0 0.0
    %405 = vmatpush1.msra.mxu0 0.0
    %406 = vmatprep.subr.mxu0 0.0
    %407 = vmatpush1.msra.mxu0 0.0
    %408 = vmatprep.subr.mxu0 0.0
    %409 = vmatpush1.msra.mxu0 0.0
    %410 = vmatprep.subr.mxu0 0.0
    %411 = vmatpush1.msra.mxu0 0.0
    %412 = vmatprep.subr.mxu0 0.0
    %413 = vmatpush1.msra.mxu0 0.0
    %414 = vmatprep.subr.mxu0 0.0
    %415 = vmatpush1.msra.mxu0 0.0
    %416 = vmatprep.subr.mxu0 0.0
    %417 = vmatpush1.msra.mxu0 0.0
    %418 = vmatprep.subr.mxu0 0.0
    %419 = vmatpush1.msra.mxu0 0.0
    %420 = vmatprep.subr.mxu0 0.0
    %421 = vmatpush1.msra.mxu0 %v165
    %422 = vmatprep.subr.mxu0 0.0
    %423 = vmatpush1.msra.mxu0 %v160
    %424 = vmatprep.subr.mxu0 0.0
    %425 = vmatpush2.msra.mxu0 0.0
    %426 = vmatprep.subr.mxu0 0.0
    %427 = vmatpush2.msra.mxu0 0.0
    %428 = vmatprep.subr.mxu0 0.0
    %429 = vmatpush2.msra.mxu0 0.0
    %430 = vmatprep.subr.mxu0 0.0
    %431 = vmatpush2.msra.mxu0 0.0
    %432 = vmatprep.subr.mxu0 0.0
    %433 = vmatpush2.msra.mxu0 0.0
    %434 = vmatprep.subr.mxu0 0.0
    %435 = vmatpush2.msra.mxu0 0.0
    %436 = vmatprep.subr.mxu0 0.0
    %437 = vmatpush2.msra.mxu0 0.0
    %438 = vmatprep.subr.mxu0 0.0
    %439 = vmatpush2.msra.mxu0 0.0
    %440 = vmatprep.subr.mxu0 0.0
    %441 = vmatpush2.msra.mxu0 0.0
    %442 = vmatprep.subr.mxu0 0.0
    %443 = vmatpush2.msra.mxu0 0.0
    %444 = vmatprep.subr.mxu0 0.0
    %445 = vmatpush2.msra.mxu0 0.0
    %446 = vmatprep.subr.mxu0 0.0
    %447 = vmatpush2.msra.mxu0 0.0
    %448 = vmatprep.subr.mxu0 0.0
    %449 = vmatpush2.msra.mxu0 0.0
    %450 = vmatprep.subr.mxu0 0.0
    %451 = vmatpush2.msra.mxu0 0.0
    %452 = vmatprep.subr.mxu0 0.0
    %453 = vmatpush2.msra.mxu0 0.0
    %454 = vmatprep.subr.mxu0 0.0
    %455 = vmatpush2.msra.mxu0 0.0
    %456 = vmatprep.mubr.f32.mxu0 0.0
    %457 = vmatmul.mubr.f32.gmra.mxu0 %v387
    %v458 = vpop.f32.mrf.mxu0
    %v459 = vadd.f32 0.0, %v458
    %v460 = vpop.f32.mrf.mxu0
    %461 = vmatprep.mubr.f32.mxu0 0.0
    %462 = vmatmul.mubr.f32.gmra.mxu0 %v390
    %v463 = vpop.f32.mrf.mxu0
    %v464 = vadd.f32 0.0, %v463
    %v465 = vpop.f32.mrf.mxu0
    %466 = vdwg.mxu0
    %467 = vset.pattern.permute.xlu0 1
    %468 = vperm.xlu0 %467, %v323
    %v469 = vpop.permute.xlu0 %468
    %471 = vset.pattern.permute.xlu0 1
    %472 = vperm.xlu0 %471, %v328
    %v473 = vpop.permute.xlu0 %472
    %v475 = vlaneseq
    %v476 = vshrl.u32 %v475, 7
    %v477 = vsub.s32 1, %v476
    %v478 = vrot.slane %v244, %v477
    %v479 = vadd.f32 %v469, %v478
    %v480 = vadd.f32 %v473, %v478
    %vm481 = vcmp.gt.f32.partialorder %v479, 0.0
    %vm482 = vcmp.gt.f32.partialorder %v480, 0.0
    %v483 = vmul.f32 %v479, 0.2
    %v484 = vmul.f32 %v480, 0.2
    %v485 = vsel %vm481, %v479, %v483
    %v486 = vsel %vm482, %v480, %v484
    %v487 = vsel %vm331, %v485, -1e+30
    %v488 = vsel %vm332, %v486, -1e+30
    %v489 = vsel %vm357, %v487, -inf
    %490 = vmax.xlane.f32.xlu0 %v489
    %v491 = vpop.xlane.xlu0 %490
    %v492 = vsel %vm357, %v488, -inf
    %493 = vmax.xlane.f32.xlu0 %v492
    %v494 = vpop.xlane.xlu0 %493
    %v495 = vsub.f32 %v487, %v491
    %v496 = vsub.f32 %v488, %v494
    %v497 = vmul.f32 %v495, 1.442695
    %v498 = vpow.pop %v497
    %v499 = vmul.f32 %v496, 1.442695
    %v500 = vpow.pop %v499
    %v501 = vsel %vm331, %v498, 0.0
    %v502 = vsel %vm332, %v500, 0.0
    %v503 = vsel %vm357, %v501, 0.0
    %504 = vadd.xlane.f32.xlu0 %v503
    %v505 = vpop.xlane.xlu0 %504
    %v506 = vsel %vm357, %v502, 0.0
    %507 = vadd.xlane.f32.xlu0 %v506
    %v508 = vpop.xlane.xlu0 %507
    %v509 = vmax.f32 %v505, 1e-30
    %v510 = vmax.f32 %v508, 1e-30
    %v511 = vrcp.pop %v509
    %v512 = vmul.f32 1.0, %v511
    %v513 = vrcp.pop %v510
    %v514 = vmul.f32 1.0, %v513
    %v515 = vmul.f32 %v501, %v512
    %v516 = vmul.f32 %v502, %v514
    %517 = vrot.lane.b32.xlu0 %v160, 120
    %v518 = vpop.permute.xlu0 %517
    %519 = vrot.lane.b32.xlu0 %v165, 120
    %v520 = vpop.permute.xlu0 %519
    %v524 = vsel %vm357, %v515, 0
    %v527 = vsel %vm357, %v516, 0
    %529 = vmatprep.subr.mxu0 0.0
    %530 = vmatpush1.msra.mxu0 0.0
    %531 = vmatprep.subr.mxu0 0.0
    %532 = vmatpush1.msra.mxu0 0.0
    %533 = vmatprep.subr.mxu0 0.0
    %534 = vmatpush1.msra.mxu0 0.0
    %535 = vmatprep.subr.mxu0 0.0
    %536 = vmatpush1.msra.mxu0 0.0
    %537 = vmatprep.subr.mxu0 0.0
    %538 = vmatpush1.msra.mxu0 0.0
    %539 = vmatprep.subr.mxu0 0.0
    %540 = vmatpush1.msra.mxu0 0.0
    %541 = vmatprep.subr.mxu0 0.0
    %542 = vmatpush1.msra.mxu0 0.0
    %543 = vmatprep.subr.mxu0 0.0
    %544 = vmatpush1.msra.mxu0 0.0
    %545 = vmatprep.subr.mxu0 0.0
    %546 = vmatpush1.msra.mxu0 0.0
    %547 = vmatprep.subr.mxu0 0.0
    %548 = vmatpush1.msra.mxu0 0.0
    %549 = vmatprep.subr.mxu0 0.0
    %550 = vmatpush1.msra.mxu0 0.0
    %551 = vmatprep.subr.mxu0 0.0
    %552 = vmatpush1.msra.mxu0 0.0
    %553 = vmatprep.subr.mxu0 0.0
    %554 = vmatpush1.msra.mxu0 0.0
    %555 = vmatprep.subr.mxu0 0.0
    %556 = vmatpush1.msra.mxu0 0.0
    %557 = vmatprep.subr.mxu0 0.0
    %558 = vmatpush1.msra.mxu0 %v520
    %559 = vmatprep.subr.mxu0 0.0
    %560 = vmatpush1.msra.mxu0 %v518
    %561 = vmatprep.subr.mxu0 0.0
    %562 = vmatpush2.msra.mxu0 0.0
    %563 = vmatprep.subr.mxu0 0.0
    %564 = vmatpush2.msra.mxu0 0.0
    %565 = vmatprep.subr.mxu0 0.0
    %566 = vmatpush2.msra.mxu0 0.0
    %567 = vmatprep.subr.mxu0 0.0
    %568 = vmatpush2.msra.mxu0 0.0
    %569 = vmatprep.subr.mxu0 0.0
    %570 = vmatpush2.msra.mxu0 0.0
    %571 = vmatprep.subr.mxu0 0.0
    %572 = vmatpush2.msra.mxu0 0.0
    %573 = vmatprep.subr.mxu0 0.0
    %574 = vmatpush2.msra.mxu0 0.0
    %575 = vmatprep.subr.mxu0 0.0
    %576 = vmatpush2.msra.mxu0 0.0
    %577 = vmatprep.subr.mxu0 0.0
    %578 = vmatpush2.msra.mxu0 0.0
    %579 = vmatprep.subr.mxu0 0.0
    %580 = vmatpush2.msra.mxu0 0.0
    %581 = vmatprep.subr.mxu0 0.0
    %582 = vmatpush2.msra.mxu0 0.0
    %583 = vmatprep.subr.mxu0 0.0
    %584 = vmatpush2.msra.mxu0 0.0
    %585 = vmatprep.subr.mxu0 0.0
    %586 = vmatpush2.msra.mxu0 0.0
    %587 = vmatprep.subr.mxu0 0.0
    %588 = vmatpush2.msra.mxu0 0.0
    %589 = vmatprep.subr.mxu0 0.0
    %590 = vmatpush2.msra.mxu0 0.0
    %591 = vmatprep.subr.mxu0 0.0
    %592 = vmatpush2.msra.mxu0 0.0
    %593 = vmatprep.mubr.f32.mxu0 0.0
    %594 = vmatmul.mubr.f32.gmra.mxu0 %v524
    %v595 = vpop.f32.mrf.mxu0
    %v596 = vadd.f32 0.0, %v595
    %v597 = vpop.f32.mrf.mxu0
    %598 = vmatprep.mubr.f32.mxu0 0.0
    %599 = vmatmul.mubr.f32.gmra.mxu0 %v527
    %v600 = vpop.f32.mrf.mxu0
    %v601 = vadd.f32 0.0, %v600
    %v602 = vpop.f32.mrf.mxu0
    %603 = vdwg.mxu0
    %604 = vset.pattern.permute.xlu0 2
    %605 = vperm.xlu0 %604, %v323
    %v606 = vpop.permute.xlu0 %605
    %608 = vset.pattern.permute.xlu0 2
    %609 = vperm.xlu0 %608, %v328
    %v610 = vpop.permute.xlu0 %609
    %v612 = vlaneseq
    %v613 = vshrl.u32 %v612, 7
    %v614 = vsub.s32 2, %v613
    %v615 = vrot.slane %v244, %v614
    %v616 = vadd.f32 %v606, %v615
    %v617 = vadd.f32 %v610, %v615
    %vm618 = vcmp.gt.f32.partialorder %v616, 0.0
    %vm619 = vcmp.gt.f32.partialorder %v617, 0.0
    %v620 = vmul.f32 %v616, 0.2
    %v621 = vmul.f32 %v617, 0.2
    %v622 = vsel %vm618, %v616, %v620
    %v623 = vsel %vm619, %v617, %v621
    %v624 = vsel %vm331, %v622, -1e+30
    %v625 = vsel %vm332, %v623, -1e+30
    %v626 = vsel %vm357, %v624, -inf
    %627 = vmax.xlane.f32.xlu0 %v626
    %v628 = vpop.xlane.xlu0 %627
    %v629 = vsel %vm357, %v625, -inf
    %630 = vmax.xlane.f32.xlu0 %v629
    %v631 = vpop.xlane.xlu0 %630
    %v632 = vsub.f32 %v624, %v628
    %v633 = vsub.f32 %v625, %v631
    %v634 = vmul.f32 %v632, 1.442695
    %v635 = vpow.pop %v634
    %v636 = vmul.f32 %v633, 1.442695
    %v637 = vpow.pop %v636
    %v638 = vsel %vm331, %v635, 0.0
    %v639 = vsel %vm332, %v637, 0.0
    %v640 = vsel %vm357, %v638, 0.0
    %641 = vadd.xlane.f32.xlu0 %v640
    %v642 = vpop.xlane.xlu0 %641
    %v643 = vsel %vm357, %v639, 0.0
    %644 = vadd.xlane.f32.xlu0 %v643
    %v645 = vpop.xlane.xlu0 %644
    %v646 = vmax.f32 %v642, 1e-30
    %v647 = vmax.f32 %v645, 1e-30
    %v648 = vrcp.pop %v646
    %v649 = vmul.f32 1.0, %v648
    %v650 = vrcp.pop %v647
    %v651 = vmul.f32 1.0, %v650
    %v652 = vmul.f32 %v638, %v649
    %v653 = vmul.f32 %v639, %v651
    %654 = vrot.lane.b32.xlu0 %v160, 112
    %v655 = vpop.permute.xlu0 %654
    %656 = vrot.lane.b32.xlu0 %v165, 112
    %v657 = vpop.permute.xlu0 %656
    %v661 = vsel %vm357, %v652, 0
    %v664 = vsel %vm357, %v653, 0
    %666 = vmatprep.subr.mxu0 0.0
    %667 = vmatpush1.msra.mxu0 0.0
    %668 = vmatprep.subr.mxu0 0.0
    %669 = vmatpush1.msra.mxu0 0.0
    %670 = vmatprep.subr.mxu0 0.0
    %671 = vmatpush1.msra.mxu0 0.0
    %672 = vmatprep.subr.mxu0 0.0
    %673 = vmatpush1.msra.mxu0 0.0
    %674 = vmatprep.subr.mxu0 0.0
    %675 = vmatpush1.msra.mxu0 0.0
    %676 = vmatprep.subr.mxu0 0.0
    %677 = vmatpush1.msra.mxu0 0.0
    %678 = vmatprep.subr.mxu0 0.0
    %679 = vmatpush1.msra.mxu0 0.0
    %680 = vmatprep.subr.mxu0 0.0
    %681 = vmatpush1.msra.mxu0 0.0
    %682 = vmatprep.subr.mxu0 0.0
    %683 = vmatpush1.msra.mxu0 0.0
    %684 = vmatprep.subr.mxu0 0.0
    %685 = vmatpush1.msra.mxu0 0.0
    %686 = vmatprep.subr.mxu0 0.0
    %687 = vmatpush1.msra.mxu0 0.0
    %688 = vmatprep.subr.mxu0 0.0
    %689 = vmatpush1.msra.mxu0 0.0
    %690 = vmatprep.subr.mxu0 0.0
    %691 = vmatpush1.msra.mxu0 0.0
    %692 = vmatprep.subr.mxu0 0.0
    %693 = vmatpush1.msra.mxu0 0.0
    %694 = vmatprep.subr.mxu0 0.0
    %695 = vmatpush1.msra.mxu0 %v657
    %696 = vmatprep.subr.mxu0 0.0
    %697 = vmatpush1.msra.mxu0 %v655
    %698 = vmatprep.subr.mxu0 0.0
    %699 = vmatpush2.msra.mxu0 0.0
    %700 = vmatprep.subr.mxu0 0.0
    %701 = vmatpush2.msra.mxu0 0.0
    %702 = vmatprep.subr.mxu0 0.0
    %703 = vmatpush2.msra.mxu0 0.0
    %704 = vmatprep.subr.mxu0 0.0
    %705 = vmatpush2.msra.mxu0 0.0
    %706 = vmatprep.subr.mxu0 0.0
    %707 = vmatpush2.msra.mxu0 0.0
    %708 = vmatprep.subr.mxu0 0.0
    %709 = vmatpush2.msra.mxu0 0.0
    %710 = vmatprep.subr.mxu0 0.0
    %711 = vmatpush2.msra.mxu0 0.0
    %712 = vmatprep.subr.mxu0 0.0
    %713 = vmatpush2.msra.mxu0 0.0
    %714 = vmatprep.subr.mxu0 0.0
    %715 = vmatpush2.msra.mxu0 0.0
    %716 = vmatprep.subr.mxu0 0.0
    %717 = vmatpush2.msra.mxu0 0.0
    %718 = vmatprep.subr.mxu0 0.0
    %719 = vmatpush2.msra.mxu0 0.0
    %720 = vmatprep.subr.mxu0 0.0
    %721 = vmatpush2.msra.mxu0 0.0
    %722 = vmatprep.subr.mxu0 0.0
    %723 = vmatpush2.msra.mxu0 0.0
    %724 = vmatprep.subr.mxu0 0.0
    %725 = vmatpush2.msra.mxu0 0.0
    %726 = vmatprep.subr.mxu0 0.0
    %727 = vmatpush2.msra.mxu0 0.0
    %728 = vmatprep.subr.mxu0 0.0
    %729 = vmatpush2.msra.mxu0 0.0
    %730 = vmatprep.mubr.f32.mxu0 0.0
    %731 = vmatmul.mubr.f32.gmra.mxu0 %v661
    %v732 = vpop.f32.mrf.mxu0
    %v733 = vadd.f32 0.0, %v732
    %v734 = vpop.f32.mrf.mxu0
    %735 = vmatprep.mubr.f32.mxu0 0.0
    %736 = vmatmul.mubr.f32.gmra.mxu0 %v664
    %v737 = vpop.f32.mrf.mxu0
    %v738 = vadd.f32 0.0, %v737
    %v739 = vpop.f32.mrf.mxu0
    %740 = vdwg.mxu0
    %741 = vset.pattern.permute.xlu0 3
    %742 = vperm.xlu0 %741, %v323
    %v743 = vpop.permute.xlu0 %742
    %745 = vset.pattern.permute.xlu0 3
    %746 = vperm.xlu0 %745, %v328
    %v747 = vpop.permute.xlu0 %746
    %v749 = vlaneseq
    %v750 = vshrl.u32 %v749, 7
    %v751 = vsub.s32 3, %v750
    %v752 = vrot.slane %v244, %v751
    %v753 = vadd.f32 %v743, %v752
    %v754 = vadd.f32 %v747, %v752
    %vm755 = vcmp.gt.f32.partialorder %v753, 0.0
    %vm756 = vcmp.gt.f32.partialorder %v754, 0.0
    %v757 = vmul.f32 %v753, 0.2
    %v758 = vmul.f32 %v754, 0.2
    %v759 = vsel %vm755, %v753, %v757
    %v760 = vsel %vm756, %v754, %v758
    %v761 = vsel %vm331, %v759, -1e+30
    %v762 = vsel %vm332, %v760, -1e+30
    %v763 = vsel %vm357, %v761, -inf
    %764 = vmax.xlane.f32.xlu0 %v763
    %v765 = vpop.xlane.xlu0 %764
    %v766 = vsel %vm357, %v762, -inf
    %767 = vmax.xlane.f32.xlu0 %v766
    %v768 = vpop.xlane.xlu0 %767
    %v769 = vsub.f32 %v761, %v765
    %v770 = vsub.f32 %v762, %v768
    %v771 = vmul.f32 %v769, 1.442695
    %v772 = vpow.pop %v771
    %v773 = vmul.f32 %v770, 1.442695
    %v774 = vpow.pop %v773
    %v775 = vsel %vm331, %v772, 0.0
    %v776 = vsel %vm332, %v774, 0.0
    %v777 = vsel %vm357, %v775, 0.0
    %778 = vadd.xlane.f32.xlu0 %v777
    %v779 = vpop.xlane.xlu0 %778
    %v780 = vsel %vm357, %v776, 0.0
    %781 = vadd.xlane.f32.xlu0 %v780
    %v782 = vpop.xlane.xlu0 %781
    %v783 = vmax.f32 %v779, 1e-30
    %v784 = vmax.f32 %v782, 1e-30
    %v785 = vrcp.pop %v783
    %v786 = vmul.f32 1.0, %v785
    %v787 = vrcp.pop %v784
    %v788 = vmul.f32 1.0, %v787
    %v789 = vmul.f32 %v775, %v786
    %v790 = vmul.f32 %v776, %v788
    %791 = vrot.lane.b32.xlu0 %v160, 104
    %v792 = vpop.permute.xlu0 %791
    %793 = vrot.lane.b32.xlu0 %v165, 104
    %v794 = vpop.permute.xlu0 %793
    %v798 = vsel %vm357, %v789, 0
    %v801 = vsel %vm357, %v790, 0
    %803 = vmatprep.subr.mxu0 0.0
    %804 = vmatpush1.msra.mxu0 0.0
    %805 = vmatprep.subr.mxu0 0.0
    %806 = vmatpush1.msra.mxu0 0.0
    %807 = vmatprep.subr.mxu0 0.0
    %808 = vmatpush1.msra.mxu0 0.0
    %809 = vmatprep.subr.mxu0 0.0
    %810 = vmatpush1.msra.mxu0 0.0
    %811 = vmatprep.subr.mxu0 0.0
    %812 = vmatpush1.msra.mxu0 0.0
    %813 = vmatprep.subr.mxu0 0.0
    %814 = vmatpush1.msra.mxu0 0.0
    %815 = vmatprep.subr.mxu0 0.0
    %816 = vmatpush1.msra.mxu0 0.0
    %817 = vmatprep.subr.mxu0 0.0
    %818 = vmatpush1.msra.mxu0 0.0
    %819 = vmatprep.subr.mxu0 0.0
    %820 = vmatpush1.msra.mxu0 0.0
    %821 = vmatprep.subr.mxu0 0.0
    %822 = vmatpush1.msra.mxu0 0.0
    %823 = vmatprep.subr.mxu0 0.0
    %824 = vmatpush1.msra.mxu0 0.0
    %825 = vmatprep.subr.mxu0 0.0
    %826 = vmatpush1.msra.mxu0 0.0
    %827 = vmatprep.subr.mxu0 0.0
    %828 = vmatpush1.msra.mxu0 0.0
    %829 = vmatprep.subr.mxu0 0.0
    %830 = vmatpush1.msra.mxu0 0.0
    %831 = vmatprep.subr.mxu0 0.0
    %832 = vmatpush1.msra.mxu0 %v794
    %833 = vmatprep.subr.mxu0 0.0
    %834 = vmatpush1.msra.mxu0 %v792
    %835 = vmatprep.subr.mxu0 0.0
    %836 = vmatpush2.msra.mxu0 0.0
    %837 = vmatprep.subr.mxu0 0.0
    %838 = vmatpush2.msra.mxu0 0.0
    %839 = vmatprep.subr.mxu0 0.0
    %840 = vmatpush2.msra.mxu0 0.0
    %841 = vmatprep.subr.mxu0 0.0
    %842 = vmatpush2.msra.mxu0 0.0
    %843 = vmatprep.subr.mxu0 0.0
    %844 = vmatpush2.msra.mxu0 0.0
    %845 = vmatprep.subr.mxu0 0.0
    %846 = vmatpush2.msra.mxu0 0.0
    %847 = vmatprep.subr.mxu0 0.0
    %848 = vmatpush2.msra.mxu0 0.0
    %849 = vmatprep.subr.mxu0 0.0
    %850 = vmatpush2.msra.mxu0 0.0
    %851 = vmatprep.subr.mxu0 0.0
    %852 = vmatpush2.msra.mxu0 0.0
    %853 = vmatprep.subr.mxu0 0.0
    %854 = vmatpush2.msra.mxu0 0.0
    %855 = vmatprep.subr.mxu0 0.0
    %856 = vmatpush2.msra.mxu0 0.0
    %857 = vmatprep.subr.mxu0 0.0
    %858 = vmatpush2.msra.mxu0 0.0
    %859 = vmatprep.subr.mxu0 0.0
    %860 = vmatpush2.msra.mxu0 0.0
    %861 = vmatprep.subr.mxu0 0.0
    %862 = vmatpush2.msra.mxu0 0.0
    %863 = vmatprep.subr.mxu0 0.0
    %864 = vmatpush2.msra.mxu0 0.0
    %865 = vmatprep.subr.mxu0 0.0
    %866 = vmatpush2.msra.mxu0 0.0
    %867 = vmatprep.mubr.f32.mxu0 0.0
    %868 = vmatmul.mubr.f32.gmra.mxu0 %v798
    %v869 = vpop.f32.mrf.mxu0
    %v870 = vadd.f32 0.0, %v869
    %v871 = vpop.f32.mrf.mxu0
    %872 = vmatprep.mubr.f32.mxu0 0.0
    %873 = vmatmul.mubr.f32.gmra.mxu0 %v801
    %v874 = vpop.f32.mrf.mxu0
    %v875 = vadd.f32 0.0, %v874
    %v876 = vpop.f32.mrf.mxu0
    %877 = vdwg.mxu0
    %880 = vrot.lane.b32.xlu0 %v596, 8
    %v881 = vpop.permute.xlu0 %880
    %882 = vrot.lane.b32.xlu0 %v601, 8
    %v883 = vpop.permute.xlu0 %882
    %888 = vrot.lane.b32.xlu0 %v733, 16
    %v889 = vpop.permute.xlu0 %888
    %890 = vrot.lane.b32.xlu0 %v738, 16
    %v891 = vpop.permute.xlu0 %890
    %896 = vrot.lane.b32.xlu0 %v870, 24
    %v897 = vpop.permute.xlu0 %896
    %898 = vrot.lane.b32.xlu0 %v875, 24
    %v899 = vpop.permute.xlu0 %898
    %vm902 = vcmask 64512
    %v903 = vsel %vm902, %v459, %v881
    %v904 = vsel %vm902, %v464, %v883
    %v905 = vsel %vm357, %v903, %v889
    %v906 = vsel %vm357, %v904, %v891
    %vm907 = vcmask 195584
    %v908 = vsel %vm907, %v905, %v897
    %v909 = vsel %vm907, %v906, %v899
    %910 = vst.msk [vmem:[#allocation8] sm:$0xff] %vm86, %v908
    %911 = vst.msk [vmem:[#allocation8 + $0x8] sm:$0xff] %vm86, %v909
    // Predicated region
    $region42: #{tpu_custom_call.1} parent=1 // pred_check
      _
    $region43: #{tpu_custom_call.1} parent=1 // pred_check_branch
      %913 = sbr.rel (0) target = $region45
    $region44: #{tpu_custom_call.1} parent=1 // pred_region
      %s915 = ssub.s32 256, 256
      %916 = vsyncadd [#allocation4], %s915
      %s917 = sshll.u32 [#allocation8], 4
      %s918 = int_to_ptr.vmem [resolvable:$true] %s917
      %923 = dma.vmem_to_hbm [thread:$0]  %s918, 256, %s7, [#allocation4], 128, 128, 8
    $region45: #{tpu_custom_call.1} parent=1 // pred_fallthru
      _
    // Predicated region
    $region46: #{tpu_custom_call.1} parent=1 // pred_check
      _
    $region47: #{tpu_custom_call.1} parent=1 // pred_check_branch
      %925 = sbr.rel (0) target = $region49
    $region48: #{tpu_custom_call.1} parent=1 // pred_region
      %926 = dma.done [#allocation4], 256
    $region49: #{tpu_custom_call.1} parent=1 // pred_fallthru
      _
    %927 = vsyncpa [#allocation3], 1
    %928 = vsyncpa [#allocation6], 1
    %929 = vsyncpa [#allocation4], 1

</llo_original>
